<compile_context>
chip_gen: v5e
topology: v5e:2x2
jax: 0.10.0
libtpu: 0.0.40
codegen_flags: <defaults>
</compile_context>

<pallas_src>
import jax
import jax.numpy as jnp
from jax.experimental import pallas as pl
from jax.experimental.pallas import tpu as pltpu

_LANE = 128
_SUBLANE = 8
# Per-tile byte budget: 3 streams (x, sc, out) x 2 pipeline buffers x tile
# stays at ~12 MiB, under the smallest default scoped-VMEM limit (16 MiB, v5e).
_TILE_BYTES = 2 * 1024 * 1024


def _add_kernel(x_ref, sc_ref, o_ref):
    # Single VALU add per vreg; rides free next to the 2 vld + 1 vst slots.
    o_ref[...] = x_ref[...] + sc_ref[...]


def _round_up(v: int, m: int) -> int:
    return ((v + m - 1) // m) * m


def _tiled_add_2d(x2: jax.Array, sc2: jax.Array) -> jax.Array:
    """Elementwise add over a 2D slab, tiled over rows with large blocks."""
    rows, cols = x2.shape
    bytes_per_row = cols * x2.dtype.itemsize

    # Largest row tile within the VMEM budget, multiple of 8 sublanes.
    tile_r = max(_SUBLANE, (_TILE_BYTES // bytes_per_row) // _SUBLANE * _SUBLANE)
    tile_r = min(tile_r, rows)
    # Ensure >= 2 grid steps when the array is big enough so the parallel
    # axis can shard across v7x's two TensorCores (no-op on v5e/v6e).
    if tile_r == rows and rows >= 2 * _SUBLANE:
        tile_r = _round_up(pl.cdiv(rows, 2), _SUBLANE)

    grid = (pl.cdiv(rows, tile_r),)  # partial trailing block handled by Pallas
    spec = pl.BlockSpec((tile_r, cols), lambda i: (i, 0))

    return pl.pallas_call(
        _add_kernel,
        out_shape=jax.ShapeDtypeStruct((rows, cols), x2.dtype),
        grid=grid,
        in_specs=[spec, spec],
        out_specs=spec,
        input_output_aliases={0: 0},  # write the result back into x's buffer
        compiler_params=pltpu.CompilerParams(
            dimension_semantics=("parallel",)),
    )(x2, sc2)


def self_connection_outro_add(x: jax.Array, sc_temp: jax.Array) -> jax.Array:
    """Pallas implementation of x + self_connection_temp (same shape/dtype)."""
    assert x.shape == sc_temp.shape and x.dtype == sc_temp.dtype
    orig_shape = x.shape
    total = x.size

    if total % _LANE == 0:
        # Fast path: view the whole problem as a lane-dense (total/128, 128)
        # slab -> unmasked full-width vector stores, contiguous DMA blocks.
        rows = total // _LANE
        out = _tiled_add_2d(x.reshape(rows, _LANE), sc_temp.reshape(rows, _LANE))
        return out.reshape(orig_shape)

    # Fallback: operate directly on (num_nodes, feat).  Stores on a feature
    # dim that is not a multiple of 128 are lane-masked (slower) but this
    # avoids any host-side pad/copy round trip.
    lead = orig_shape[0] if len(orig_shape) >= 1 else 1
    x2 = x.reshape(lead, -1)
    sc2 = sc_temp.reshape(lead, -1)
    out = _tiled_add_2d(x2, sc2)
    return out.reshape(orig_shape)


def self_connection_outro(data: dict, *, key_x: str = "x",
                          key_temp: str = "self_cont_tmp") -> dict:
    """Dict-level wrapper mirroring the PyTorch module's forward()."""
    data = dict(data)  # shallow copy, like mutating an AtomGraphData
    data[key_x] = self_connection_outro_add(data[key_x], data[key_temp])
    del data[key_temp]  # pure Python dict op, no kernel equivalent needed
    return data


if __name__ == "__main__":
    key = jax.random.PRNGKey(0)
    k1, k2, k3, k4 = jax.random.split(key, 4)

    # Case 1: lane-dense fast path (num_nodes * feat is a multiple of 128).
    n1, f1 = 64, 128
    x1 = jax.random.normal(k1, (n1, f1), dtype=jnp.float32)
    s1 = jax.random.normal(k2, (n1, f1), dtype=jnp.float32)
    ref1 = x1 + s1
    data = {"x": x1, "self_cont_tmp": s1}
    out = self_connection_outro(data)
    res1 = jax.block_until_ready(out["x"])
    assert "self_cont_tmp" not in out
    assert jnp.allclose(res1, ref1, atol=1e-6), "mismatch vs reference (case 1)"

    # Case 2: ragged node count + non-128-aligned irreps feature dim.
    n2, f2 = 37, 120
    x2 = jax.random.normal(k3, (n2, f2), dtype=jnp.float32)
    s2 = jax.random.normal(k4, (n2, f2), dtype=jnp.float32)
    ref2 = x2 + s2
    res2 = jax.block_until_ready(self_connection_outro_add(x2, s2))
    assert jnp.allclose(res2, ref2, atol=1e-6), "mismatch vs reference (case 2)"

    print("KERNEL_OK")
</pallas_src>

<mosaic_0001>
module attributes {stable_mosaic.version = 11 : i64} {
  func.func @_add_kernel(%arg0: i32, %arg1: memref<32x128xf32, #tpu.memory_space<vmem>>, %arg2: memref<32x128xf32, #tpu.memory_space<vmem>>, %arg3: memref<32x128xf32, #tpu.memory_space<vmem>>) attributes {dimension_semantics = [#tpu.dimension_semantics<parallel>], iteration_bounds = array<i64: 2>, scalar_prefetch = 0 : i64, scratch_operands = 0 : i64, tpu.core_type = #tpu.core_type<tc>, window_params = [{transform_indices = @transform_0, window_bounds = array<i64: 32, 128>}, {transform_indices = @transform_1, window_bounds = array<i64: 32, 128>}, {transform_indices = @transform_2, window_bounds = array<i64: 32, 128>}]} {
    %c0 = arith.constant 0 : index
    %c0_0 = arith.constant 0 : index
    %0 = vector.load %arg1[%c0, %c0_0] : memref<32x128xf32, #tpu.memory_space<vmem>>, vector<32x128xf32>
    %c0_1 = arith.constant 0 : index
    %c0_2 = arith.constant 0 : index
    %1 = vector.load %arg2[%c0_1, %c0_2] : memref<32x128xf32, #tpu.memory_space<vmem>>, vector<32x128xf32>
    %2 = arith.addf %0, %1 : vector<32x128xf32>
    %c0_3 = arith.constant 0 : index
    %c0_4 = arith.constant 0 : index
    %3 = vector.load %arg3[%c0_3, %c0_4] : memref<32x128xf32, #tpu.memory_space<vmem>>, vector<32x128xf32>
    tpu.vector_store %arg3[%c0_3, %c0_4], %2 {strides = array<i32>} : memref<32x128xf32, #tpu.memory_space<vmem>>, vector<32x128xf32>,
    return
  }
  func.func @transform_0(%arg0: i32) -> (i32, i32) {
    %c0_i32 = arith.constant 0 : i32
    %c0_i32_0 = arith.constant 0 : i32
    return %arg0, %c0_i32 : i32, i32
  }
  func.func @transform_1(%arg0: i32) -> (i32, i32) {
    %c0_i32 = arith.constant 0 : i32
    %c0_i32_0 = arith.constant 0 : i32
    return %arg0, %c0_i32 : i32, i32
  }
  func.func @transform_2(%arg0: i32) -> (i32, i32) {
    %c0_i32 = arith.constant 0 : i32
    %c0_i32_0 = arith.constant 0 : i32
    return %arg0, %c0_i32 : i32, i32
  }
}

</mosaic_0001>

<llo_original>
// kernel: tpu_custom_call.1
$region0: #{tpu_custom_call.1}
  #allocation0 [shape = 'u32[]', space=smem, size = 0x4, offset = 0x4, fixed_abs, tag = 'smem constant byte address 0x4 - core index']
  #allocation1 [shape = 'u32[72,128]{1,0:T(1,128)}', space=vmem, size = 0x9000, scoped, tag = 'internal scratch']
  %s0 = inlined_call_operand.hbm [shape: f32[64,128], index: 0, kind: input, shape index: {}, may-alias: {0,2}]
  %s1 = inlined_call_operand.vmem [shape: f32[64,128], index: 1, kind: input, shape index: {}]
  %s2 = inlined_call_operand.hbm [shape: f32[64,128], index: 2, kind: output, shape index: {}, may-alias: {0,2}]
  %s3 = sld [smem:[#allocation0]]
  $region45: #{tpu_custom_call.1} parent=0
    _
  %s5 = ssub.s32 1, %s3
  %s6 = scalar_select 0, %s5, %s3
  $region1: #{tpu_custom_call.1} parent=0
    #allocation2 [shape = 'u8[32768]{0}', space=vmem, size = 0x8000, scoped, tag = 'input window, operand 0']
    #allocation3 [shape = 's32[2]{0}', space=sflag, size = 0x8, scoped, tag = 'scoped memory for tpu_custom_call.1']
    #allocation4 [shape = 's32[2]{0}', space=sflag, size = 0x8, scoped, tag = 'scoped memory for tpu_custom_call.1']
    #allocation5 [shape = 'u8[32768]{0}', space=vmem, size = 0x8000, scoped, tag = 'output window, operand 0']
    %7 = vsyncpa [#allocation3], 0
    %s8 = scalar_lea.sflag [#allocation3], 1
    %9 = vsyncpa %s8, 0
    %10 = vsyncpa [#allocation4], 0
    %s11 = scalar_lea.sflag [#allocation4], 1
    %12 = vsyncpa %s11, 0
    loop: start=0, step=1, limit=4
    $region2: #{tpu_custom_call.1} parent=1 // loop_pre_header
      _
    $region3: #{tpu_custom_call.1} parent=1 // loop_header
      %s14 = sphi 0, %s18
      %p15 = scmp.ge.s32.totalorder %s14, 4
      %s24 = sphi 0, %s26
      %s27 = sphi 0, %s24
      %s28 = sphi 0, %s27
      %s44 = sphi 0, %s28
      %s50 = sphi 0, %s52
      %s53 = sphi 0, %s50
      %s54 = sphi 0, %s53
      %s70 = sphi 0, %s54
      %s76 = sphi 0, %s78
      %s79 = sphi 0, %s76
      %s80 = sphi 0, %s79
      %s96 = sphi 0, %s80
    $region4: #{tpu_custom_call.1} parent=1 // loop_header_branch
      %17 = sbr.rel (%p15) target = $region8
    $region5: #{tpu_custom_call.1} parent=1 // loop_body
      %s19 = ssub.s32 %s14, 1
      %s20 = ssub.s32 %s14, 2
      %s21 = sadd.s32 %s14, 1
      %s22 = ssub.s32 %s14, %s21
      %p23 = scmp.eq.s32.totalorder %s22, 0
      %s25 = sadd.s32 %s24, 1
      %s26 = scalar_select %p23, %s24, %s25
      %p29 = pneg %p23
      %p30 = scmp.eq.s32.totalorder %s14, 1
      %p31 = por %p29, %p30
      %p32 = scmp.ne.s32.totalorder %s24, %s27
      %p33 = scmp.eq.s32.totalorder %s14, 0
      %p34 = por %p32, %p33
      %p35 = scmp.ne.s32.totalorder %s24, %s27
      %p36 = scmp.eq.s32.totalorder %s19, 1
      %p37 = por %p35, %p36
      %p38 = scmp.ne.s32.totalorder %s27, %s28
      %p39 = scmp.eq.s32.totalorder %s19, 0
      %p40 = por %p38, %p39
      %p41 = scmp.ne.s32.totalorder %s27, %s28
      %p42 = scmp.eq.s32.totalorder %s20, 1
      %p43 = por %p41, %p42
      %p45 = scmp.ne.s32.totalorder %s28, %s44
      %p46 = scmp.eq.s32.totalorder %s20, 0
      %p47 = por %p45, %p46
      %s48 = ssub.s32 %s14, %s21
      %p49 = scmp.eq.s32.totalorder %s48, 0
      %s51 = sadd.s32 %s50, 1
      %s52 = scalar_select %p49, %s50, %s51
      %p55 = pneg %p49
      %p56 = scmp.eq.s32.totalorder %s14, 1
      %p57 = por %p55, %p56
      %p58 = scmp.ne.s32.totalorder %s50, %s53
      %p59 = scmp.eq.s32.totalorder %s14, 0
      %p60 = por %p58, %p59
      %p61 = scmp.ne.s32.totalorder %s50, %s53
      %p62 = scmp.eq.s32.totalorder %s19, 1
      %p63 = por %p61, %p62
      %p64 = scmp.ne.s32.totalorder %s53, %s54
      %p65 = scmp.eq.s32.totalorder %s19, 0
      %p66 = por %p64, %p65
      %p67 = scmp.ne.s32.totalorder %s53, %s54
      %p68 = scmp.eq.s32.totalorder %s20, 1
      %p69 = por %p67, %p68
      %p71 = scmp.ne.s32.totalorder %s54, %s70
      %p72 = scmp.eq.s32.totalorder %s20, 0
      %p73 = por %p71, %p72
      %s74 = ssub.s32 %s14, %s21
      %p75 = scmp.eq.s32.totalorder %s74, 0
      %s77 = sadd.s32 %s76, 1
      %s78 = scalar_select %p75, %s76, %s77
      %p81 = pneg %p75
      %p82 = scmp.eq.s32.totalorder %s14, 1
      %p83 = por %p81, %p82
      %p84 = scmp.ne.s32.totalorder %s76, %s79
      %p85 = scmp.eq.s32.totalorder %s14, 0
      %p86 = por %p84, %p85
      %p87 = scmp.ne.s32.totalorder %s76, %s79
      %p88 = scmp.eq.s32.totalorder %s19, 1
      %p89 = por %p87, %p88
      %p90 = scmp.ne.s32.totalorder %s79, %s80
      %p91 = scmp.eq.s32.totalorder %s19, 0
      %p92 = por %p90, %p91
      %p93 = scmp.ne.s32.totalorder %s79, %s80
      %p94 = scmp.eq.s32.totalorder %s20, 1
      %p95 = por %p93, %p94
      %p97 = scmp.ne.s32.totalorder %s80, %s96
      %p98 = scmp.eq.s32.totalorder %s20, 0
      %p99 = por %p97, %p98
      %p100 = scmp.le.s32.totalorder 1, %s14
      %p101 = scmp.lt.s32.totalorder %s14, 3
      %p102 = pnand %p100, %p101
      %p103 = pneg %p102
      // Predicated region
      $region9: #{tpu_custom_call.1} parent=5 // pred_check
        _
      $region10: #{tpu_custom_call.1} parent=5 // pred_check_branch
        %105 = sbr.rel (%p102) target = $region12
      $region11: #{tpu_custom_call.1} parent=5 // pred_region
        %s106 = ssub.s32 %s14, 1
      $region12: #{tpu_custom_call.1} parent=5 // pred_fallthru
        _
      %p107 = scmp.lt.s32.totalorder %s14, 2
      // Predicated region
      $region13: #{tpu_custom_call.1} parent=5 // pred_check
        %p108 = pneg %p107
      $region14: #{tpu_custom_call.1} parent=5 // pred_check_branch
        %110 = sbr.rel (%p108) target = $region16
      $region15: #{tpu_custom_call.1} parent=5 // pred_region
        // Predicated region
        $region17: #{tpu_custom_call.1} parent=15 // pred_check
          %p111 = pneg %p34
        $region18: #{tpu_custom_call.1} parent=15 // pred_check_branch
          %113 = sbr.rel (%p111) target = $region20
        $region19: #{tpu_custom_call.1} parent=15 // pred_region
          %s114 = sand.u32 %s24, 1
          %s115 = scalar_lea.sflag [#allocation3], %s114
          %s116 = sand.u32 %s24, 1
          %s117 = smul.addr %s116, 32
          %s118 = scalar_lea.vmem [#allocation2], %s117
          %s119 = smul.u32 4, %s14
          %121 = vsyncadd %s115, 0
          %s122 = smul.addr %s119, 8
          %s123 = scalar_lea.hbm %s0, %s122
          %s124 = sshll.u32 %s123, 4
          %s125 = int_to_ptr.hbm [resolvable:$true] %s124
          %s126 = sshll.u32 %s118, 4
          %s127 = int_to_ptr.vmem [resolvable:$true] %s126
          %132 = dma.hbm_to_vmem [thread:$0]  %s125, 512, %s127, %s115, 128, 128, 8
        $region20: #{tpu_custom_call.1} parent=15 // pred_fallthru
          _
        // Predicated region
        $region21: #{tpu_custom_call.1} parent=15 // pred_check
          %p133 = pneg %p60
        $region22: #{tpu_custom_call.1} parent=15 // pred_check_branch
          %135 = sbr.rel (%p133) target = $region24
        $region23: #{tpu_custom_call.1} parent=15 // pred_region
          %s136 = smul.u32 4, %s14
          %p137 = scmp.lt.s32.totalorder %s136, 7
          %s138 = scalar_select %p137, %s136, 7
          %s139 = smul.addr %s138, 8
          %s140 = scalar_lea.vmem %s1, %s139
          %s141 = smul.u32 4, %s14
        $region24: #{tpu_custom_call.1} parent=15 // pred_fallthru
          _
      $region16: #{tpu_custom_call.1} parent=5 // pred_fallthru
        _
      %p142 = scmp.le.s32.totalorder 1, %s14
      %p143 = scmp.lt.s32.totalorder %s14, 3
      %p144 = pnand %p142, %p143
      %p145 = pneg %p144
      // Predicated region
      $region25: #{tpu_custom_call.1} parent=5 // pred_check
        _
      $region26: #{tpu_custom_call.1} parent=5 // pred_check_branch
        %147 = sbr.rel (%p144) target = $region28
      $region27: #{tpu_custom_call.1} parent=5 // pred_region
        %s148 = ssub.s32 %s14, 1
        %s149 = sand.u32 %s27, 1
        %s150 = scalar_lea.sflag [#allocation3], %s149
        %s151 = sand.u32 %s27, 1
        %s152 = smul.addr %s151, 32
        %s153 = scalar_lea.vmem [#allocation2], %s152
        // Predicated region
        $region29: #{tpu_custom_call.1} parent=27 // pred_check
          %p154 = pneg %p40
        $region30: #{tpu_custom_call.1} parent=27 // pred_check_branch
          %156 = sbr.rel (%p154) target = $region32
        $region31: #{tpu_custom_call.1} parent=27 // pred_region
          %158 = dma.done %s150, 512
        $region32: #{tpu_custom_call.1} parent=27 // pred_fallthru
          _
        %s159 = sand.u32 %s27, 1
        %s160 = scalar_lea.sflag [#allocation3], %s159
        %s161 = sand.u32 %s27, 1
        %s162 = smul.addr %s161, 32
        %s163 = scalar_lea.vmem [#allocation2], %s162
        %p164 = pneg %p40
        %p165 = pneg %p37
        %s166 = smul.u32 4, %s19
        %p167 = scmp.lt.s32.totalorder %s166, 7
        %s168 = scalar_select %p167, %s166, 7
        %s169 = smul.addr %s168, 8
        %s170 = scalar_lea.vmem %s1, %s169
        %p171 = pneg %p66
        %p172 = pneg %p63
        %p173 = pneg %p92
        %p174 = pneg %p89
        %s175 = sand.u32 %s79, 1
        %s176 = scalar_lea.sflag [#allocation4], %s175
        %s177 = sand.u32 %s79, 1
        %s178 = smul.addr %s177, 32
        %s179 = scalar_lea.vmem [#allocation5], %s178
        %s180 = smul.u32 4, %s19
        %s181 = smul.u32 4, %s19
        %p182 = scmp.lt.s32.totalorder %s181, 7
        %s183 = scalar_select %p182, %s181, 7
        %s184 = smul.addr %s183, 8
        %s185 = scalar_lea.vmem %s1, %s184
        %s186 = smul.u32 4, %s19
        %s187 = smul.u32 4, %s19
        %v188 = vld [vmem:[%s153] sm:$0xff]
        %v189 = vld [vmem:[%s153 + $0x8] sm:$0xff]
        %v190 = vld [vmem:[%s153 + $0x10] sm:$0xff]
        %v191 = vld [vmem:[%s153 + $0x18] sm:$0xff]
        %v192 = vld [vmem:[%s185] sm:$0xff]
        %v193 = vld [vmem:[%s185 + $0x8] sm:$0xff]
        %v194 = vld [vmem:[%s185 + $0x10] sm:$0xff]
        %v195 = vld [vmem:[%s185 + $0x18] sm:$0xff]
        %v196 = vadd.f32 %v188, %v192
        %v197 = vadd.f32 %v189, %v193
        %v198 = vadd.f32 %v190, %v194
        %v199 = vadd.f32 %v191, %v195
        %200 = vst [vmem:[%s179] sm:$0xff] %v196
        %201 = vst [vmem:[%s179 + $0x8] sm:$0xff] %v197
        %202 = vst [vmem:[%s179 + $0x10] sm:$0xff] %v198
        %203 = vst [vmem:[%s179 + $0x18] sm:$0xff] %v199
        %s204 = sand.u32 %s79, 1
        %s205 = scalar_lea.sflag [#allocation4], %s204
        %s206 = sand.u32 %s79, 1
        %s207 = smul.addr %s206, 32
        %s208 = scalar_lea.vmem [#allocation5], %s207
        // Predicated region
        $region33: #{tpu_custom_call.1} parent=27 // pred_check
          %p209 = pneg %p89
        $region34: #{tpu_custom_call.1} parent=27 // pred_check_branch
          %211 = sbr.rel (%p209) target = $region36
        $region35: #{tpu_custom_call.1} parent=27 // pred_region
          %s212 = smul.u32 4, %s19
          %214 = vsyncadd %s205, 0
          %s215 = smul.addr %s212, 8
          %s216 = scalar_lea.hbm %s2, %s215
          %s217 = sshll.u32 %s208, 4
          %s218 = int_to_ptr.vmem [resolvable:$true] %s217
          %s219 = sshll.u32 %s216, 4
          %s220 = int_to_ptr.hbm [resolvable:$true] %s219
          %225 = dma.vmem_to_hbm [thread:$0]  %s218, 512, %s220, %s205, 128, 128, 8
        $region36: #{tpu_custom_call.1} parent=27 // pred_fallthru
          _
      $region28: #{tpu_custom_call.1} parent=5 // pred_fallthru
        _
      %p226 = scmp.le.s32.totalorder 2, %s14
      // Predicated region
      $region37: #{tpu_custom_call.1} parent=5 // pred_check
        %p227 = pneg %p226
      $region38: #{tpu_custom_call.1} parent=5 // pred_check_branch
        %229 = sbr.rel (%p227) target = $region40
      $region39: #{tpu_custom_call.1} parent=5 // pred_region
        %s230 = ssub.s32 %s14, 2
        // Predicated region
        $region41: #{tpu_custom_call.1} parent=39 // pred_check
          %p231 = pneg %p95
        $region42: #{tpu_custom_call.1} parent=39 // pred_check_branch
          %233 = sbr.rel (%p231) target = $region44
        $region43: #{tpu_custom_call.1} parent=39 // pred_region
          %s234 = sand.u32 %s80, 1
          %s235 = scalar_lea.sflag [#allocation4], %s234
          %s236 = sand.u32 %s80, 1
          %s237 = smul.addr %s236, 32
          %s238 = scalar_lea.vmem [#allocation5], %s237
          %240 = dma.done %s235, 512
        $region44: #{tpu_custom_call.1} parent=39 // pred_fallthru
          _
      $region40: #{tpu_custom_call.1} parent=5 // pred_fallthru
        _
    $region6: #{tpu_custom_call.1} parent=1 // loop_footer
      %s18 = sadd.s32 1, %s14
    $region7: #{tpu_custom_call.1} parent=1 // loop_footer_branch
      %13 = sbr.rel target = $region3
    $region8: #{tpu_custom_call.1} parent=1 // loop_exit
      _
    %241 = vsyncpa [#allocation3], 1
    %s242 = scalar_lea.sflag [#allocation3], 1
    %243 = vsyncpa %s242, 1
    %244 = vsyncpa [#allocation4], 1
    %s245 = scalar_lea.sflag [#allocation4], 1
    %246 = vsyncpa %s245, 1

</llo_original>
